<compile_context>
chip_gen: v7x
topology: tpu7x:2x2x1
jax: 0.10.0
libtpu: 0.0.40
codegen_flags: <defaults>
</compile_context>

<pallas_src>
import functools

import jax
import jax.numpy as jnp
from jax import lax
from jax.experimental import pallas as pl
from jax.experimental.pallas import tpu as pltpu
from jax.scipy.linalg import block_diag

_EPS = 1e-5


# ----------------------------------------------------------------------------
# Fused ResNeXt-unit kernel: one batch element per grid step.
# refs = (x, w1, b1, wg_big, bg, w3, b3, [ws, bs,] out, pad_scratch, xbig_scratch)
# ----------------------------------------------------------------------------
def _resnext_kernel(*refs, H, W, has_proj):
    if has_proj:
        (x_ref, w1_ref, b1_ref, wg_ref, bg_ref, w3_ref, b3_ref,
         ws_ref, bs_ref, o_ref, pad_ref, xbig_ref) = refs
    else:
        (x_ref, w1_ref, b1_ref, wg_ref, bg_ref, w3_ref, b3_ref,
         o_ref, pad_ref, xbig_ref) = refs
        ws_ref = bs_ref = None

    HW = H * W
    P = W + 1                       # flat zero-pad wide enough for all 9 taps
    mp = w1_ref.shape[0]            # mid rounded up to a sublane tile (8)

    x = x_ref[0].astype(jnp.float32)                     # (Cin, H*W) lane-dense

    # ---- conv1 (1x1) + bn1:  (mp, Cin) @ (Cin, HW) -> (mp, HW) --------------
    y1 = jnp.dot(w1_ref[...], x, preferred_element_type=jnp.float32) + b1_ref[...]

    # ---- grouped conv2 (3x3, pad=1) + bn2 -----------------------------------
    # Flat zero-padded copy of y1: pad_ref[:, P + q] = y1[:, q].
    pad_ref[...] = jnp.zeros_like(pad_ref)
    pad_ref[:, pl.ds(P, HW)] = y1

    # Column masks (only the dx = +/-1 taps can wrap across a row boundary).
    col = lax.broadcasted_iota(jnp.int32, (mp, HW), 1) % W
    mask_pos = col != (W - 1)       # valid outputs for dx = +1
    mask_neg = col != 0             # valid outputs for dx = -1

    # Stack the 9 lane-shifted taps into a (9*mp, HW) staging buffer so the
    # whole grouped conv becomes ONE MXU matmul (K = 9*mp) instead of 9 tiny
    # K=mid matmuls.  All sublane offsets are multiples of 8 -> aligned stores.
    t = 0
    for dy in (-1, 0, 1):
        for dx in (-1, 0, 1):
            tap = pad_ref[:, pl.ds(P + dy * W + dx, HW)]      # (mp, HW)
            if dx == 1:
                tap = jnp.where(mask_pos, tap, 0.0)
            elif dx == -1:
                tap = jnp.where(mask_neg, tap, 0.0)
            xbig_ref[t * mp:(t + 1) * mp, :] = tap
            t += 1

    y2 = jnp.dot(wg_ref[...], xbig_ref[...],
                 preferred_element_type=jnp.float32) + bg_ref[...]

    # ---- conv3 (1x1) + bn3, fused with the shortcut -------------------------
    y3 = jnp.dot(w3_ref[...], y2, preferred_element_type=jnp.float32) + b3_ref[...]
    if has_proj:
        sc = jnp.dot(ws_ref[...], x, preferred_element_type=jnp.float32) + bs_ref[...]
    else:
        sc = x
    o_ref[0] = (y3 + sc).astype(o_ref.dtype)


# ----------------------------------------------------------------------------
# Host-side parameter preparation (BN folding, tap-packed grouped-conv weights)
# ----------------------------------------------------------------------------
def _fold_bn_pw(w, b, gamma, beta, mean, var):
    # w: (Cin, Cout); fold per output channel
    s = gamma / jnp.sqrt(var + _EPS)
    return w * s[None, :], s * (b - mean) + beta


def _fold_bn_grouped(wg, b, gamma, beta, mean, var):
    # wg: (G, 3, 3, cg_in, cg_out); channel order is group-major
    G = wg.shape[0]
    cg = wg.shape[-1]
    s = gamma / jnp.sqrt(var + _EPS)
    return wg * s.reshape(G, 1, 1, 1, cg), s * (b - mean) + beta


def _pack_tap_weights(wg, mid, mid_pad):
    # wg: (G, 3, 3, cg_in, cg_out) -> (mid_pad, 9*mid_pad): one dense matrix
    # whose K axis is [tap0 | tap1 | ... | tap8]; each tap block is the
    # block-diagonal (out_ch, in_ch) matrix in group-major channel order,
    # zero-padded from mid to mid_pad rows/cols.
    G = wg.shape[0]
    taps = jnp.stack([block_diag(*[wg[g, ky, kx].T for g in range(G)])
                      for ky in range(3) for kx in range(3)])       # (9, mid, mid)
    w = jnp.zeros((mid_pad, 9, mid_pad), jnp.float32)
    w = w.at[:mid, :, :mid].set(jnp.transpose(taps, (1, 0, 2)))
    return w.reshape(mid_pad, 9 * mid_pad)


def _pad_rows(w, rows):
    out = jnp.zeros((rows,) + w.shape[1:], jnp.float32)
    return out.at[: w.shape[0]].set(w.astype(jnp.float32))


# ----------------------------------------------------------------------------
# ResNeXtUnit forward (wrapper)
# ----------------------------------------------------------------------------
def resnext_unit(x_nchw, p, *, stride, groups):
    del groups  # group structure is already encoded in p["wg"]'s shape
    N, Cin, H, W = x_nchw.shape
    mid = p["w1"].shape[1]
    Cout = p["w3"].shape[1]
    mid_pad = ((mid + 7) // 8) * 8
    has_proj = "ws" in p

    w1, b1 = _fold_bn_pw(p["w1"], p["b1"], p["g1"], p["be1"], p["m1"], p["v1"])
    wg, bg = _fold_bn_grouped(p["wg"], p["bg"], p["g2"], p["be2"], p["m2"], p["v2"])
    w3, b3 = _fold_bn_pw(p["w3"], p["b3"], p["g3"], p["be3"], p["m3"], p["v3"])

    # Zero-pad the "mid" channel dimension up to a multiple of 8 so every
    # in-kernel sublane offset / matmul operand is tile-aligned.
    w1p = _pad_rows(w1.T, mid_pad)                                   # (mid_pad, Cin)
    b1p = _pad_rows(b1.reshape(mid, 1), mid_pad)                     # (mid_pad, 1)
    wgp = _pack_tap_weights(wg, mid, mid_pad)                        # (mid_pad, 9*mid_pad)
    bgp = _pad_rows(bg.reshape(mid, 1), mid_pad)                     # (mid_pad, 1)
    w3p = jnp.zeros((Cout, mid_pad), jnp.float32).at[:, :mid].set(
        w3.T.astype(jnp.float32))                                    # (Cout, mid_pad)
    b3p = b3.reshape(Cout, 1).astype(jnp.float32)

    x = x_nchw.reshape(N, Cin, H * W)   # pure reshape, no transpose pass

    args = [x, w1p, b1p, wgp, bgp, w3p, b3p]
    in_specs = [
        pl.BlockSpec((1, Cin, H * W), lambda n: (n, 0, 0)),
        pl.BlockSpec((mid_pad, Cin), lambda n: (0, 0)),
        pl.BlockSpec((mid_pad, 1), lambda n: (0, 0)),
        pl.BlockSpec((mid_pad, 9 * mid_pad), lambda n: (0, 0)),
        pl.BlockSpec((mid_pad, 1), lambda n: (0, 0)),
        pl.BlockSpec((Cout, mid_pad), lambda n: (0, 0)),
        pl.BlockSpec((Cout, 1), lambda n: (0, 0)),
    ]
    if has_proj:
        ws, bs = _fold_bn_pw(p["ws"], p["bs"], p["gs"], p["bes"], p["ms"], p["vs"])
        args += [ws.T.astype(jnp.float32), bs.reshape(Cout, 1).astype(jnp.float32)]
        in_specs += [pl.BlockSpec((Cout, Cin), lambda n: (0, 0)),
                     pl.BlockSpec((Cout, 1), lambda n: (0, 0))]

    kern = functools.partial(_resnext_kernel, H=H, W=W, has_proj=has_proj)
    out = pl.pallas_call(
        kern,
        out_shape=jax.ShapeDtypeStruct((N, Cout, H * W), x_nchw.dtype),
        grid=(N,),
        in_specs=in_specs,
        out_specs=pl.BlockSpec((1, Cout, H * W), lambda n: (n, 0, 0)),
        scratch_shapes=[
            pltpu.VMEM((mid_pad, H * W + 2 * (W + 1)), jnp.float32),  # flat pad
            pltpu.VMEM((9 * mid_pad, H * W), jnp.float32),            # stacked taps
        ],
        compiler_params=pltpu.CompilerParams(
            dimension_semantics=("parallel",)),
    )(*args)

    out = out.reshape(N, Cout, H, W)
    if stride > 1:
        # All convs here commute with output decimation (pad=1 3x3 and 1x1s),
        # so the stride-s result is the stride-1 result sampled every s pixels.
        out = out[:, :, ::stride, ::stride]
    return out


# ----------------------------------------------------------------------------
# Pure-JAX reference (for correctness check)
# ----------------------------------------------------------------------------
def reference(x, p, *, stride, groups):
    Cin = x.shape[1]
    mid = p["w1"].shape[1]
    Cout = p["w3"].shape[1]
    cg = mid // groups

    def conv(x, w_oihw, b, st=1, pad=0, fgc=1):
        y = lax.conv_general_dilated(
            x, w_oihw, (st, st), [(pad, pad), (pad, pad)],
            dimension_numbers=("NCHW", "OIHW", "NCHW"), feature_group_count=fgc)
        return y + b[None, :, None, None]

    def bn(x, g, be, m, v):
        return (g[None, :, None, None] * (x - m[None, :, None, None])
                / jnp.sqrt(v[None, :, None, None] + _EPS) + be[None, :, None, None])

    w1 = p["w1"].T[:, :, None, None]
    y = bn(conv(x, w1, p["b1"]), p["g1"], p["be1"], p["m1"], p["v1"])
    wg = jnp.transpose(p["wg"], (0, 4, 3, 1, 2)).reshape(mid, cg, 3, 3)
    y = bn(conv(y, wg, p["bg"], st=stride, pad=1, fgc=groups),
           p["g2"], p["be2"], p["m2"], p["v2"])
    w3 = p["w3"].T[:, :, None, None]
    y = bn(conv(y, w3, p["b3"]), p["g3"], p["be3"], p["m3"], p["v3"])
    if Cin == Cout:
        sc = x
    else:
        ws = p["ws"].T[:, :, None, None]
        sc = bn(conv(x, ws, p["bs"], st=stride), p["gs"], p["bes"], p["ms"], p["vs"])
    return y + sc


# ----------------------------------------------------------------------------
# Deterministic parameter init
# ----------------------------------------------------------------------------
def init_params(key, Cin, Cout, mid, groups):
    cg = mid // groups
    ks = jax.random.split(key, 8)

    def bn_params(c, base):
        r = jnp.arange(c, dtype=jnp.float32)
        return (1.0 + 0.1 * r / c,            # gamma
                0.05 * r - 0.02 * base,       # beta
                0.01 * r,                     # running_mean
                1.0 + 0.02 * r)               # running_var

    p = {}
    p["w1"] = 0.2 * jax.random.normal(ks[0], (Cin, mid), jnp.float32)
    p["b1"] = 0.1 * jax.random.normal(ks[1], (mid,), jnp.float32)
    p["g1"], p["be1"], p["m1"], p["v1"] = bn_params(mid, 1.0)
    p["wg"] = 0.2 * jax.random.normal(ks[2], (groups, 3, 3, cg, cg), jnp.float32)
    p["bg"] = 0.1 * jax.random.normal(ks[3], (mid,), jnp.float32)
    p["g2"], p["be2"], p["m2"], p["v2"] = bn_params(mid, 2.0)
    p["w3"] = 0.2 * jax.random.normal(ks[4], (mid, Cout), jnp.float32)
    p["b3"] = 0.1 * jax.random.normal(ks[5], (Cout,), jnp.float32)
    p["g3"], p["be3"], p["m3"], p["v3"] = bn_params(Cout, 3.0)
    if Cin != Cout:
        p["ws"] = 0.2 * jax.random.normal(ks[6], (Cin, Cout), jnp.float32)
        p["bs"] = 0.1 * jax.random.normal(ks[7], (Cout,), jnp.float32)
        p["gs"], p["bes"], p["ms"], p["vs"] = bn_params(Cout, 4.0)
    return p


if __name__ == "__main__":
    key = jax.random.PRNGKey(0)
    H = W = 16
    configs = [
        # (N, Cin, Cout, groups, stride); mid = Cout // 2 (module default)
        (2, 4, 8, 2, 1),   # projection shortcut
        (2, 8, 8, 2, 1),   # identity shortcut
        (2, 4, 8, 2, 2),   # strided block with projection shortcut
    ]
    for idx, (N, Cin, Cout, groups, stride) in enumerate(configs):
        k_x, k_p = jax.random.split(jax.random.fold_in(key, idx))
        mid = Cout // 2
        x = jax.random.normal(k_x, (N, Cin, H, W), jnp.float32)
        params = init_params(k_p, Cin, Cout, mid, groups)

        out = jax.block_until_ready(
            resnext_unit(x, params, stride=stride, groups=groups))
        ref = reference(x, params, stride=stride, groups=groups)

        Ho = (H + 2 - 3) // stride + 1
        assert out.shape == ref.shape == (N, Cout, Ho, Ho), (out.shape, ref.shape)
        err = float(jnp.max(jnp.abs(out - ref)))
        assert bool(jnp.allclose(out, ref, atol=1e-4, rtol=1e-4)), (
            "config %d: max abs err = %g" % (idx, err))

    print("KERNEL_OK")
</pallas_src>

<mosaic_0001>
module attributes {stable_mosaic.version = 11 : i64} {
  func.func @_resnext_kernel(%arg0: i32, %arg1: memref<1x4x256xf32, #tpu.memory_space<vmem>>, %arg2: memref<8x4xf32, #tpu.memory_space<vmem>>, %arg3: memref<8x1xf32, #tpu.memory_space<vmem>>, %arg4: memref<8x72xf32, #tpu.memory_space<vmem>>, %arg5: memref<8x1xf32, #tpu.memory_space<vmem>>, %arg6: memref<8x8xf32, #tpu.memory_space<vmem>>, %arg7: memref<8x1xf32, #tpu.memory_space<vmem>>, %arg8: memref<8x4xf32, #tpu.memory_space<vmem>>, %arg9: memref<8x1xf32, #tpu.memory_space<vmem>>, %arg10: memref<1x8x256xf32, #tpu.memory_space<vmem>>, %arg11: memref<8x290xf32, #tpu.memory_space<vmem>>, %arg12: memref<72x256xf32, #tpu.memory_space<vmem>>) attributes {dimension_semantics = [#tpu.dimension_semantics<parallel>], iteration_bounds = array<i64: 2>, scalar_prefetch = 0 : i64, scratch_operands = 2 : i64, tpu.core_type = #tpu.core_type<tc>, window_params = [{transform_indices = @transform_0, window_bounds = array<i64: 1, 4, 256>}, {pipeline_mode = #tpu.pipeline_mode<synchronous>, transform_indices = @transform_1, window_bounds = array<i64: 8, 4>}, {pipeline_mode = #tpu.pipeline_mode<synchronous>, transform_indices = @transform_2, window_bounds = array<i64: 8, 1>}, {pipeline_mode = #tpu.pipeline_mode<synchronous>, transform_indices = @transform_3, window_bounds = array<i64: 8, 72>}, {pipeline_mode = #tpu.pipeline_mode<synchronous>, transform_indices = @transform_4, window_bounds = array<i64: 8, 1>}, {pipeline_mode = #tpu.pipeline_mode<synchronous>, transform_indices = @transform_5, window_bounds = array<i64: 8, 8>}, {pipeline_mode = #tpu.pipeline_mode<synchronous>, transform_indices = @transform_6, window_bounds = array<i64: 8, 1>}, {pipeline_mode = #tpu.pipeline_mode<synchronous>, transform_indices = @transform_7, window_bounds = array<i64: 8, 4>}, {pipeline_mode = #tpu.pipeline_mode<synchronous>, transform_indices = @transform_8, window_bounds = array<i64: 8, 1>}, {transform_indices = @transform_9, window_bounds = array<i64: 1, 8, 256>}]} {
    %c0 = arith.constant 0 : index
    %c0_0 = arith.constant 0 : index
    %c0_1 = arith.constant 0 : index
    %0 = vector.load %arg1[%c0, %c0_0, %c0_1] : memref<1x4x256xf32, #tpu.memory_space<vmem>>, vector<1x4x256xf32>
    %1 = vector.shape_cast %0 : vector<1x4x256xf32> to vector<4x256xf32>
    %c0_2 = arith.constant 0 : index
    %c0_3 = arith.constant 0 : index
    %2 = vector.load %arg2[%c0_2, %c0_3] : memref<8x4xf32, #tpu.memory_space<vmem>>, vector<8x4xf32>
    %cst = arith.constant dense<0.000000e+00> : vector<8x256xf32>
    %3 = tpu.matmul %2, %1, %cst {dimension_numbers = #tpu.dot_dimension_numbers<[1], [0], [0], [1], [0, 0, 1, 1], [], []>} : vector<8x4xf32>, vector<4x256xf32>, vector<8x256xf32> -> vector<8x256xf32>
    %c0_4 = arith.constant 0 : index
    %c0_5 = arith.constant 0 : index
    %4 = vector.load %arg3[%c0_4, %c0_5] : memref<8x1xf32, #tpu.memory_space<vmem>>, vector<8x1xf32>
    %5 = vector.broadcast %4 : vector<8x1xf32> to vector<8x256xf32>
    %6 = arith.addf %3, %5 : vector<8x256xf32>
    %cst_6 = arith.constant 0.000000e+00 : f32
    %7 = vector.broadcast %cst_6 : f32 to vector<8x290xf32>
    %c0_7 = arith.constant 0 : index
    %c0_8 = arith.constant 0 : index
    %8 = vector.load %arg11[%c0_7, %c0_8] : memref<8x290xf32, #tpu.memory_space<vmem>>, vector<8x290xf32>
    tpu.vector_store %arg11[%c0_7, %c0_8], %7 {strides = array<i32>} : memref<8x290xf32, #tpu.memory_space<vmem>>, vector<8x290xf32>,
    %c0_9 = arith.constant 0 : index
    %c17 = arith.constant 17 : index
    %9 = vector.load %arg11[%c0_9, %c17] : memref<8x290xf32, #tpu.memory_space<vmem>>, vector<8x256xf32>
    tpu.vector_store %arg11[%c0_9, %c17], %6 {strides = array<i32>} : memref<8x290xf32, #tpu.memory_space<vmem>>, vector<8x256xf32>,
    %10 = tpu.iota {dimensions = array<i32: 1>} : vector<8x256xi32>
    %c16_i32 = arith.constant 16 : i32
    %c0_i32 = arith.constant 0 : i32
    %11 = arith.cmpi eq, %c16_i32, %c0_i32 : i32
    %c1_i32 = arith.constant 1 : i32
    %12 = arith.select %11, %c1_i32, %c16_i32 : i32
    %13 = vector.broadcast %12 : i32 to vector<8x256xi32>
    %14 = arith.remsi %10, %13 : vector<8x256xi32>
    %c0_i32_10 = arith.constant 0 : i32
    %15 = vector.broadcast %c0_i32_10 : i32 to vector<8x256xi32>
    %16 = arith.cmpi ne, %14, %15 : vector<8x256xi32>
    %c0_i32_11 = arith.constant 0 : i32
    %17 = vector.broadcast %c0_i32_11 : i32 to vector<8x256xi32>
    %18 = arith.cmpi slt, %14, %17 : vector<8x256xi32>
    %c0_i32_12 = arith.constant 0 : i32
    %19 = arith.cmpi slt, %12, %c0_i32_12 : i32
    %20 = vector.broadcast %19 : i1 to vector<8x256xi1>
    %21 = vector.broadcast %20 : vector<8x256xi1> to vector<8x256xi1>
    %22 = arith.xori %18, %21 : vector<8x256xi1>
    %23 = arith.andi %22, %16 : vector<8x256xi1>
    %24 = vector.broadcast %12 : i32 to vector<8x256xi32>
    %25 = arith.addi %14, %24 : vector<8x256xi32>
    %26 = arith.select %23, %25, %14 : vector<8x256xi1>, vector<8x256xi32>
    %c15_i32 = arith.constant 15 : i32
    %27 = vector.broadcast %c15_i32 : i32 to vector<8x256xi32>
    %28 = arith.cmpi ne, %26, %27 : vector<8x256xi32>
    %c0_i32_13 = arith.constant 0 : i32
    %29 = vector.broadcast %c0_i32_13 : i32 to vector<8x256xi32>
    %30 = arith.cmpi ne, %26, %29 : vector<8x256xi32>
    %c0_14 = arith.constant 0 : index
    %c0_15 = arith.constant 0 : index
    %31 = vector.load %arg11[%c0_14, %c0_15] : memref<8x290xf32, #tpu.memory_space<vmem>>, vector<8x256xf32>
    %cst_16 = arith.constant 0.000000e+00 : f32
    %32 = vector.broadcast %cst_16 : f32 to vector<8x256xf32>
    %33 = arith.select %30, %31, %32 : vector<8x256xi1>, vector<8x256xf32>
    %c0_17 = arith.constant 0 : index
    %c0_18 = arith.constant 0 : index
    %34 = vector.load %arg12[%c0_17, %c0_18] : memref<72x256xf32, #tpu.memory_space<vmem>>, vector<8x256xf32>
    tpu.vector_store %arg12[%c0_17, %c0_18], %33 {strides = array<i32>} : memref<72x256xf32, #tpu.memory_space<vmem>>, vector<8x256xf32>,
    %c0_19 = arith.constant 0 : index
    %c1 = arith.constant 1 : index
    %35 = vector.load %arg11[%c0_19, %c1] : memref<8x290xf32, #tpu.memory_space<vmem>>, vector<8x256xf32>
    %c8 = arith.constant 8 : index
    %c0_20 = arith.constant 0 : index
    %36 = vector.load %arg12[%c8, %c0_20] : memref<72x256xf32, #tpu.memory_space<vmem>>, vector<8x256xf32>
    tpu.vector_store %arg12[%c8, %c0_20], %35 {strides = array<i32>} : memref<72x256xf32, #tpu.memory_space<vmem>>, vector<8x256xf32>,
    %c0_21 = arith.constant 0 : index
    %c2 = arith.constant 2 : index
    %37 = vector.load %arg11[%c0_21, %c2] : memref<8x290xf32, #tpu.memory_space<vmem>>, vector<8x256xf32>
    %cst_22 = arith.constant 0.000000e+00 : f32
    %38 = vector.broadcast %cst_22 : f32 to vector<8x256xf32>
    %39 = arith.select %28, %37, %38 : vector<8x256xi1>, vector<8x256xf32>
    %c16 = arith.constant 16 : index
    %c0_23 = arith.constant 0 : index
    %40 = vector.load %arg12[%c16, %c0_23] : memref<72x256xf32, #tpu.memory_space<vmem>>, vector<8x256xf32>
    tpu.vector_store %arg12[%c16, %c0_23], %39 {strides = array<i32>} : memref<72x256xf32, #tpu.memory_space<vmem>>, vector<8x256xf32>,
    %c0_24 = arith.constant 0 : index
    %c16_25 = arith.constant 16 : index
    %41 = vector.load %arg11[%c0_24, %c16_25] : memref<8x290xf32, #tpu.memory_space<vmem>>, vector<8x256xf32>
    %cst_26 = arith.constant 0.000000e+00 : f32
    %42 = vector.broadcast %cst_26 : f32 to vector<8x256xf32>
    %43 = arith.select %30, %41, %42 : vector<8x256xi1>, vector<8x256xf32>
    %c24 = arith.constant 24 : index
    %c0_27 = arith.constant 0 : index
    %44 = vector.load %arg12[%c24, %c0_27] : memref<72x256xf32, #tpu.memory_space<vmem>>, vector<8x256xf32>
    tpu.vector_store %arg12[%c24, %c0_27], %43 {strides = array<i32>} : memref<72x256xf32, #tpu.memory_space<vmem>>, vector<8x256xf32>,
    %c0_28 = arith.constant 0 : index
    %c17_29 = arith.constant 17 : index
    %45 = vector.load %arg11[%c0_28, %c17_29] : memref<8x290xf32, #tpu.memory_space<vmem>>, vector<8x256xf32>
    %c32 = arith.constant 32 : index
    %c0_30 = arith.constant 0 : index
    %46 = vector.load %arg12[%c32, %c0_30] : memref<72x256xf32, #tpu.memory_space<vmem>>, vector<8x256xf32>
    tpu.vector_store %arg12[%c32, %c0_30], %45 {strides = array<i32>} : memref<72x256xf32, #tpu.memory_space<vmem>>, vector<8x256xf32>,
    %c0_31 = arith.constant 0 : index
    %c18 = arith.constant 18 : index
    %47 = vector.load %arg11[%c0_31, %c18] : memref<8x290xf32, #tpu.memory_space<vmem>>, vector<8x256xf32>
    %cst_32 = arith.constant 0.000000e+00 : f32
    %48 = vector.broadcast %cst_32 : f32 to vector<8x256xf32>
    %49 = arith.select %28, %47, %48 : vector<8x256xi1>, vector<8x256xf32>
    %c40 = arith.constant 40 : index
    %c0_33 = arith.constant 0 : index
    %50 = vector.load %arg12[%c40, %c0_33] : memref<72x256xf32, #tpu.memory_space<vmem>>, vector<8x256xf32>
    tpu.vector_store %arg12[%c40, %c0_33], %49 {strides = array<i32>} : memref<72x256xf32, #tpu.memory_space<vmem>>, vector<8x256xf32>,
    %c0_34 = arith.constant 0 : index
    %c32_35 = arith.constant 32 : index
    %51 = vector.load %arg11[%c0_34, %c32_35] : memref<8x290xf32, #tpu.memory_space<vmem>>, vector<8x256xf32>
    %cst_36 = arith.constant 0.000000e+00 : f32
    %52 = vector.broadcast %cst_36 : f32 to vector<8x256xf32>
    %53 = arith.select %30, %51, %52 : vector<8x256xi1>, vector<8x256xf32>
    %c48 = arith.constant 48 : index
    %c0_37 = arith.constant 0 : index
    %54 = vector.load %arg12[%c48, %c0_37] : memref<72x256xf32, #tpu.memory_space<vmem>>, vector<8x256xf32>
    tpu.vector_store %arg12[%c48, %c0_37], %53 {strides = array<i32>} : memref<72x256xf32, #tpu.memory_space<vmem>>, vector<8x256xf32>,
    %c0_38 = arith.constant 0 : index
    %c33 = arith.constant 33 : index
    %55 = vector.load %arg11[%c0_38, %c33] : memref<8x290xf32, #tpu.memory_space<vmem>>, vector<8x256xf32>
    %c56 = arith.constant 56 : index
    %c0_39 = arith.constant 0 : index
    %56 = vector.load %arg12[%c56, %c0_39] : memref<72x256xf32, #tpu.memory_space<vmem>>, vector<8x256xf32>
    tpu.vector_store %arg12[%c56, %c0_39], %55 {strides = array<i32>} : memref<72x256xf32, #tpu.memory_space<vmem>>, vector<8x256xf32>,
    %c0_40 = arith.constant 0 : index
    %c34 = arith.constant 34 : index
    %57 = vector.load %arg11[%c0_40, %c34] : memref<8x290xf32, #tpu.memory_space<vmem>>, vector<8x256xf32>
    %cst_41 = arith.constant 0.000000e+00 : f32
    %58 = vector.broadcast %cst_41 : f32 to vector<8x256xf32>
    %59 = arith.select %28, %57, %58 : vector<8x256xi1>, vector<8x256xf32>
    %c64 = arith.constant 64 : index
    %c0_42 = arith.constant 0 : index
    %60 = vector.load %arg12[%c64, %c0_42] : memref<72x256xf32, #tpu.memory_space<vmem>>, vector<8x256xf32>
    tpu.vector_store %arg12[%c64, %c0_42], %59 {strides = array<i32>} : memref<72x256xf32, #tpu.memory_space<vmem>>, vector<8x256xf32>,
    %c0_43 = arith.constant 0 : index
    %c0_44 = arith.constant 0 : index
    %61 = vector.load %arg4[%c0_43, %c0_44] : memref<8x72xf32, #tpu.memory_space<vmem>>, vector<8x72xf32>
    %c0_45 = arith.constant 0 : index
    %c0_46 = arith.constant 0 : index
    %62 = vector.load %arg12[%c0_45, %c0_46] : memref<72x256xf32, #tpu.memory_space<vmem>>, vector<72x256xf32>
    %cst_47 = arith.constant dense<0.000000e+00> : vector<8x256xf32>
    %63 = tpu.matmul %61, %62, %cst_47 {dimension_numbers = #tpu.dot_dimension_numbers<[1], [0], [0], [1], [0, 0, 1, 1], [], []>} : vector<8x72xf32>, vector<72x256xf32>, vector<8x256xf32> -> vector<8x256xf32>
    %c0_48 = arith.constant 0 : index
    %c0_49 = arith.constant 0 : index
    %64 = vector.load %arg5[%c0_48, %c0_49] : memref<8x1xf32, #tpu.memory_space<vmem>>, vector<8x1xf32>
    %65 = vector.broadcast %64 : vector<8x1xf32> to vector<8x256xf32>
    %66 = arith.addf %63, %65 : vector<8x256xf32>
    %c0_50 = arith.constant 0 : index
    %c0_51 = arith.constant 0 : index
    %67 = vector.load %arg6[%c0_50, %c0_51] : memref<8x8xf32, #tpu.memory_space<vmem>>, vector<8x8xf32>
    %cst_52 = arith.constant dense<0.000000e+00> : vector<8x256xf32>
    %68 = tpu.matmul %67, %66, %cst_52 {dimension_numbers = #tpu.dot_dimension_numbers<[1], [0], [0], [1], [0, 0, 1, 1], [], []>} : vector<8x8xf32>, vector<8x256xf32>, vector<8x256xf32> -> vector<8x256xf32>
    %c0_53 = arith.constant 0 : index
    %c0_54 = arith.constant 0 : index
    %69 = vector.load %arg7[%c0_53, %c0_54] : memref<8x1xf32, #tpu.memory_space<vmem>>, vector<8x1xf32>
    %70 = vector.broadcast %69 : vector<8x1xf32> to vector<8x256xf32>
    %71 = arith.addf %68, %70 : vector<8x256xf32>
    %c0_55 = arith.constant 0 : index
    %c0_56 = arith.constant 0 : index
    %72 = vector.load %arg8[%c0_55, %c0_56] : memref<8x4xf32, #tpu.memory_space<vmem>>, vector<8x4xf32>
    %cst_57 = arith.constant dense<0.000000e+00> : vector<8x256xf32>
    %73 = tpu.matmul %72, %1, %cst_57 {dimension_numbers = #tpu.dot_dimension_numbers<[1], [0], [0], [1], [0, 0, 1, 1], [], []>} : vector<8x4xf32>, vector<4x256xf32>, vector<8x256xf32> -> vector<8x256xf32>
    %c0_58 = arith.constant 0 : index
    %c0_59 = arith.constant 0 : index
    %74 = vector.load %arg9[%c0_58, %c0_59] : memref<8x1xf32, #tpu.memory_space<vmem>>, vector<8x1xf32>
    %75 = vector.broadcast %74 : vector<8x1xf32> to vector<8x256xf32>
    %76 = arith.addf %73, %75 : vector<8x256xf32>
    %77 = arith.addf %71, %76 : vector<8x256xf32>
    %c0_60 = arith.constant 0 : index
    %c0_61 = arith.constant 0 : index
    %c0_62 = arith.constant 0 : index
    %78 = vector.load %arg10[%c0_60, %c0_61, %c0_62] : memref<1x8x256xf32, #tpu.memory_space<vmem>>, vector<1x8x256xf32>
    %79 = vector.shape_cast %78 : vector<1x8x256xf32> to vector<8x256xf32>
    %80 = vector.shape_cast %77 : vector<8x256xf32> to vector<1x8x256xf32>
    tpu.vector_store %arg10[%c0_60, %c0_61, %c0_62], %80 {strides = array<i32>} : memref<1x8x256xf32, #tpu.memory_space<vmem>>, vector<1x8x256xf32>,
    return
  }
  func.func @transform_0(%arg0: i32) -> (i32, i32, i32) {
    %c0_i32 = arith.constant 0 : i32
    %c0_i32_0 = arith.constant 0 : i32
    %c0_i32_1 = arith.constant 0 : i32
    return %arg0, %c0_i32, %c0_i32_0 : i32, i32, i32
  }
  func.func @transform_1(%arg0: i32) -> (i32, i32) {
    %c0_i32 = arith.constant 0 : i32
    %c0_i32_0 = arith.constant 0 : i32
    %c0_i32_1 = arith.constant 0 : i32
    return %c0_i32, %c0_i32_0 : i32, i32
  }
  func.func @transform_2(%arg0: i32) -> (i32, i32) {
    %c0_i32 = arith.constant 0 : i32
    %c0_i32_0 = arith.constant 0 : i32
    %c0_i32_1 = arith.constant 0 : i32
    return %c0_i32, %c0_i32_0 : i32, i32
  }
  func.func @transform_3(%arg0: i32) -> (i32, i32) {
    %c0_i32 = arith.constant 0 : i32
    %c0_i32_0 = arith.constant 0 : i32
    %c0_i32_1 = arith.constant 0 : i32
    return %c0_i32, %c0_i32_0 : i32, i32
  }
  func.func @transform_4(%arg0: i32) -> (i32, i32) {
    %c0_i32 = arith.constant 0 : i32
    %c0_i32_0 = arith.constant 0 : i32
    %c0_i32_1 = arith.constant 0 : i32
    return %c0_i32, %c0_i32_0 : i32, i32
  }
  func.func @transform_5(%arg0: i32) -> (i32, i32) {
    %c0_i32 = arith.constant 0 : i32
    %c0_i32_0 = arith.constant 0 : i32
    %c0_i32_1 = arith.constant 0 : i32
    return %c0_i32, %c0_i32_0 : i32, i32
  }
  func.func @transform_6(%arg0: i32) -> (i32, i32) {
    %c0_i32 = arith.constant 0 : i32
    %c0_i32_0 = arith.constant 0 : i32
    %c0_i32_1 = arith.constant 0 : i32
    return %c0_i32, %c0_i32_0 : i32, i32
  }
  func.func @transform_7(%arg0: i32) -> (i32, i32) {
    %c0_i32 = arith.constant 0 : i32
    %c0_i32_0 = arith.constant 0 : i32
    %c0_i32_1 = arith.constant 0 : i32
    return %c0_i32, %c0_i32_0 : i32, i32
  }
  func.func @transform_8(%arg0: i32) -> (i32, i32) {
    %c0_i32 = arith.constant 0 : i32
    %c0_i32_0 = arith.constant 0 : i32
    %c0_i32_1 = arith.constant 0 : i32
    return %c0_i32, %c0_i32_0 : i32, i32
  }
  func.func @transform_9(%arg0: i32) -> (i32, i32, i32) {
    %c0_i32 = arith.constant 0 : i32
    %c0_i32_0 = arith.constant 0 : i32
    %c0_i32_1 = arith.constant 0 : i32
    return %arg0, %c0_i32, %c0_i32_0 : i32, i32, i32
  }
}

</mosaic_0001>

<llo_original>
// kernel: tpu_custom_call.1
$region0: #{tpu_custom_call.1}
  #allocation0 [shape = 'u32[]', space=smem, size = 0x4, offset = 0x4, fixed_abs, tag = 'smem constant byte address 0x4 - core index']
  #allocation1 [shape = 'u32[144,128]{1,0:T(1,128)}', space=vmem, size = 0x12000, scoped, tag = 'internal scratch']
  #allocation2 [shape = 'f32[8,290]{1,0:T(8,128)}', space=vmem, size = 0x3000, scoped, tag = 'scratch operand']
  #allocation3 [shape = 'f32[72,256]{1,0:T(8,128)}', space=vmem, size = 0x12000, scoped, tag = 'scratch operand']
  %s0 = inlined_call_operand.vmem [shape: f32[2,4,256], index: 0, kind: input, shape index: {}]
  %s1 = inlined_call_operand.vmem [shape: f32[8,4], index: 1, kind: input, shape index: {}]
  %s2 = inlined_call_operand.vmem [shape: f32[8,1], index: 2, kind: input, shape index: {}]
  %s3 = inlined_call_operand.vmem [shape: f32[8,72], index: 3, kind: input, shape index: {}]
  %s4 = inlined_call_operand.vmem [shape: f32[8,1], index: 4, kind: input, shape index: {}]
  %s5 = inlined_call_operand.vmem [shape: f32[8,8], index: 5, kind: input, shape index: {}]
  %s6 = inlined_call_operand.vmem [shape: f32[8,1], index: 6, kind: input, shape index: {}]
  %s7 = inlined_call_operand.vmem [shape: f32[8,4], index: 7, kind: input, shape index: {}]
  %s8 = inlined_call_operand.vmem [shape: f32[8,1], index: 8, kind: input, shape index: {}]
  %s9 = inlined_call_operand.hbm [shape: f32[2,8,256], index: 9, kind: output, shape index: {}]
  %s10 = sld [smem:[#allocation0]]
  $region69: #{tpu_custom_call.1} parent=0
    _
  %s12 = ssub.s32 1, %s10
  %s13 = scalar_select 0, %s12, %s10
  $region1: #{tpu_custom_call.1} parent=0
    #allocation4 [shape = 'u8[16384]{0}', space=vmem, size = 0x4000, scoped, tag = 'output window, operand 0']
    #allocation5 [shape = 's32[2]{0}', space=sflag, size = 0x8, scoped, tag = 'scoped memory for tpu_custom_call.1']
    %14 = vsyncpa [#allocation5], 0
    %s15 = scalar_lea.sflag [#allocation5], 1
    %16 = vsyncpa %s15, 0
    loop: start=0, step=1, limit=4
    $region2: #{tpu_custom_call.1} parent=1 // loop_pre_header
      _
    $region3: #{tpu_custom_call.1} parent=1 // loop_header
      %s18 = sphi 0, %s22
      %p19 = scmp.ge.s32.totalorder %s18, 4
      %s28 = sphi 0, %s30
      %s31 = sphi 0, %s28
      %s32 = sphi 0, %s31
      %s48 = sphi 0, %s32
      %s52 = sphi 0, %s52
      %s54 = sphi 0, %s52
      %s55 = sphi 0, %s54
      %s69 = sphi 0, %s55
      %s73 = sphi 0, %s73
      %s75 = sphi 0, %s73
      %s76 = sphi 0, %s75
      %s90 = sphi 0, %s76
      %s94 = sphi 0, %s94
      %s96 = sphi 0, %s94
      %s97 = sphi 0, %s96
      %s111 = sphi 0, %s97
      %s115 = sphi 0, %s115
      %s117 = sphi 0, %s115
      %s118 = sphi 0, %s117
      %s132 = sphi 0, %s118
      %s136 = sphi 0, %s136
      %s138 = sphi 0, %s136
      %s139 = sphi 0, %s138
      %s153 = sphi 0, %s139
      %s157 = sphi 0, %s157
      %s159 = sphi 0, %s157
      %s160 = sphi 0, %s159
      %s174 = sphi 0, %s160
      %s178 = sphi 0, %s178
      %s180 = sphi 0, %s178
      %s181 = sphi 0, %s180
      %s195 = sphi 0, %s181
      %s199 = sphi 0, %s199
      %s201 = sphi 0, %s199
      %s202 = sphi 0, %s201
      %s216 = sphi 0, %s202
      %s222 = sphi 0, %s224
      %s225 = sphi 0, %s222
      %s226 = sphi 0, %s225
      %s242 = sphi 0, %s226
    $region4: #{tpu_custom_call.1} parent=1 // loop_header_branch
      %21 = sbr.rel (%p19) target = $region8
    $region5: #{tpu_custom_call.1} parent=1 // loop_body
      %s23 = ssub.s32 %s18, 1
      %s24 = ssub.s32 %s18, 2
      %s25 = sadd.s32 %s18, 1
      %s26 = ssub.s32 %s18, %s25
      %p27 = scmp.eq.s32.totalorder %s26, 0
      %s29 = sadd.s32 %s28, 1
      %s30 = scalar_select %p27, %s28, %s29
      %p33 = pneg %p27
      %p34 = scmp.eq.s32.totalorder %s18, 1
      %p35 = por %p33, %p34
      %p36 = scmp.ne.s32.totalorder %s28, %s31
      %p37 = scmp.eq.s32.totalorder %s18, 0
      %p38 = por %p36, %p37
      %p39 = scmp.ne.s32.totalorder %s28, %s31
      %p40 = scmp.eq.s32.totalorder %s23, 1
      %p41 = por %p39, %p40
      %p42 = scmp.ne.s32.totalorder %s31, %s32
      %p43 = scmp.eq.s32.totalorder %s23, 0
      %p44 = por %p42, %p43
      %p45 = scmp.ne.s32.totalorder %s31, %s32
      %p46 = scmp.eq.s32.totalorder %s24, 1
      %p47 = por %p45, %p46
      %p49 = scmp.ne.s32.totalorder %s32, %s48
      %p50 = scmp.eq.s32.totalorder %s24, 0
      %p51 = por %p49, %p50
      %s53 = sadd.s32 %s52, 1
      %p56 = scmp.eq.s32.totalorder %s18, 1
      %p57 = scmp.ne.s32.totalorder %s52, %s54
      %p58 = scmp.eq.s32.totalorder %s18, 0
      %p59 = por %p57, %p58
      %p60 = scmp.ne.s32.totalorder %s52, %s54
      %p61 = scmp.eq.s32.totalorder %s23, 1
      %p62 = por %p60, %p61
      %p63 = scmp.ne.s32.totalorder %s54, %s55
      %p64 = scmp.eq.s32.totalorder %s23, 0
      %p65 = por %p63, %p64
      %p66 = scmp.ne.s32.totalorder %s54, %s55
      %p67 = scmp.eq.s32.totalorder %s24, 1
      %p68 = por %p66, %p67
      %p70 = scmp.ne.s32.totalorder %s55, %s69
      %p71 = scmp.eq.s32.totalorder %s24, 0
      %p72 = por %p70, %p71
      %s74 = sadd.s32 %s73, 1
      %p77 = scmp.eq.s32.totalorder %s18, 1
      %p78 = scmp.ne.s32.totalorder %s73, %s75
      %p79 = scmp.eq.s32.totalorder %s18, 0
      %p80 = por %p78, %p79
      %p81 = scmp.ne.s32.totalorder %s73, %s75
      %p82 = scmp.eq.s32.totalorder %s23, 1
      %p83 = por %p81, %p82
      %p84 = scmp.ne.s32.totalorder %s75, %s76
      %p85 = scmp.eq.s32.totalorder %s23, 0
      %p86 = por %p84, %p85
      %p87 = scmp.ne.s32.totalorder %s75, %s76
      %p88 = scmp.eq.s32.totalorder %s24, 1
      %p89 = por %p87, %p88
      %p91 = scmp.ne.s32.totalorder %s76, %s90
      %p92 = scmp.eq.s32.totalorder %s24, 0
      %p93 = por %p91, %p92
      %s95 = sadd.s32 %s94, 1
      %p98 = scmp.eq.s32.totalorder %s18, 1
      %p99 = scmp.ne.s32.totalorder %s94, %s96
      %p100 = scmp.eq.s32.totalorder %s18, 0
      %p101 = por %p99, %p100
      %p102 = scmp.ne.s32.totalorder %s94, %s96
      %p103 = scmp.eq.s32.totalorder %s23, 1
      %p104 = por %p102, %p103
      %p105 = scmp.ne.s32.totalorder %s96, %s97
      %p106 = scmp.eq.s32.totalorder %s23, 0
      %p107 = por %p105, %p106
      %p108 = scmp.ne.s32.totalorder %s96, %s97
      %p109 = scmp.eq.s32.totalorder %s24, 1
      %p110 = por %p108, %p109
      %p112 = scmp.ne.s32.totalorder %s97, %s111
      %p113 = scmp.eq.s32.totalorder %s24, 0
      %p114 = por %p112, %p113
      %s116 = sadd.s32 %s115, 1
      %p119 = scmp.eq.s32.totalorder %s18, 1
      %p120 = scmp.ne.s32.totalorder %s115, %s117
      %p121 = scmp.eq.s32.totalorder %s18, 0
      %p122 = por %p120, %p121
      %p123 = scmp.ne.s32.totalorder %s115, %s117
      %p124 = scmp.eq.s32.totalorder %s23, 1
      %p125 = por %p123, %p124
      %p126 = scmp.ne.s32.totalorder %s117, %s118
      %p127 = scmp.eq.s32.totalorder %s23, 0
      %p128 = por %p126, %p127
      %p129 = scmp.ne.s32.totalorder %s117, %s118
      %p130 = scmp.eq.s32.totalorder %s24, 1
      %p131 = por %p129, %p130
      %p133 = scmp.ne.s32.totalorder %s118, %s132
      %p134 = scmp.eq.s32.totalorder %s24, 0
      %p135 = por %p133, %p134
      %s137 = sadd.s32 %s136, 1
      %p140 = scmp.eq.s32.totalorder %s18, 1
      %p141 = scmp.ne.s32.totalorder %s136, %s138
      %p142 = scmp.eq.s32.totalorder %s18, 0
      %p143 = por %p141, %p142
      %p144 = scmp.ne.s32.totalorder %s136, %s138
      %p145 = scmp.eq.s32.totalorder %s23, 1
      %p146 = por %p144, %p145
      %p147 = scmp.ne.s32.totalorder %s138, %s139
      %p148 = scmp.eq.s32.totalorder %s23, 0
      %p149 = por %p147, %p148
      %p150 = scmp.ne.s32.totalorder %s138, %s139
      %p151 = scmp.eq.s32.totalorder %s24, 1
      %p152 = por %p150, %p151
      %p154 = scmp.ne.s32.totalorder %s139, %s153
      %p155 = scmp.eq.s32.totalorder %s24, 0
      %p156 = por %p154, %p155
      %s158 = sadd.s32 %s157, 1
      %p161 = scmp.eq.s32.totalorder %s18, 1
      %p162 = scmp.ne.s32.totalorder %s157, %s159
      %p163 = scmp.eq.s32.totalorder %s18, 0
      %p164 = por %p162, %p163
      %p165 = scmp.ne.s32.totalorder %s157, %s159
      %p166 = scmp.eq.s32.totalorder %s23, 1
      %p167 = por %p165, %p166
      %p168 = scmp.ne.s32.totalorder %s159, %s160
      %p169 = scmp.eq.s32.totalorder %s23, 0
      %p170 = por %p168, %p169
      %p171 = scmp.ne.s32.totalorder %s159, %s160
      %p172 = scmp.eq.s32.totalorder %s24, 1
      %p173 = por %p171, %p172
      %p175 = scmp.ne.s32.totalorder %s160, %s174
      %p176 = scmp.eq.s32.totalorder %s24, 0
      %p177 = por %p175, %p176
      %s179 = sadd.s32 %s178, 1
      %p182 = scmp.eq.s32.totalorder %s18, 1
      %p183 = scmp.ne.s32.totalorder %s178, %s180
      %p184 = scmp.eq.s32.totalorder %s18, 0
      %p185 = por %p183, %p184
      %p186 = scmp.ne.s32.totalorder %s178, %s180
      %p187 = scmp.eq.s32.totalorder %s23, 1
      %p188 = por %p186, %p187
      %p189 = scmp.ne.s32.totalorder %s180, %s181
      %p190 = scmp.eq.s32.totalorder %s23, 0
      %p191 = por %p189, %p190
      %p192 = scmp.ne.s32.totalorder %s180, %s181
      %p193 = scmp.eq.s32.totalorder %s24, 1
      %p194 = por %p192, %p193
      %p196 = scmp.ne.s32.totalorder %s181, %s195
      %p197 = scmp.eq.s32.totalorder %s24, 0
      %p198 = por %p196, %p197
      %s200 = sadd.s32 %s199, 1
      %p203 = scmp.eq.s32.totalorder %s18, 1
      %p204 = scmp.ne.s32.totalorder %s199, %s201
      %p205 = scmp.eq.s32.totalorder %s18, 0
      %p206 = por %p204, %p205
      %p207 = scmp.ne.s32.totalorder %s199, %s201
      %p208 = scmp.eq.s32.totalorder %s23, 1
      %p209 = por %p207, %p208
      %p210 = scmp.ne.s32.totalorder %s201, %s202
      %p211 = scmp.eq.s32.totalorder %s23, 0
      %p212 = por %p210, %p211
      %p213 = scmp.ne.s32.totalorder %s201, %s202
      %p214 = scmp.eq.s32.totalorder %s24, 1
      %p215 = por %p213, %p214
      %p217 = scmp.ne.s32.totalorder %s202, %s216
      %p218 = scmp.eq.s32.totalorder %s24, 0
      %p219 = por %p217, %p218
      %s220 = ssub.s32 %s18, %s25
      %p221 = scmp.eq.s32.totalorder %s220, 0
      %s223 = sadd.s32 %s222, 1
      %s224 = scalar_select %p221, %s222, %s223
      %p227 = pneg %p221
      %p228 = scmp.eq.s32.totalorder %s18, 1
      %p229 = por %p227, %p228
      %p230 = scmp.ne.s32.totalorder %s222, %s225
      %p231 = scmp.eq.s32.totalorder %s18, 0
      %p232 = por %p230, %p231
      %p233 = scmp.ne.s32.totalorder %s222, %s225
      %p234 = scmp.eq.s32.totalorder %s23, 1
      %p235 = por %p233, %p234
      %p236 = scmp.ne.s32.totalorder %s225, %s226
      %p237 = scmp.eq.s32.totalorder %s23, 0
      %p238 = por %p236, %p237
      %p239 = scmp.ne.s32.totalorder %s225, %s226
      %p240 = scmp.eq.s32.totalorder %s24, 1
      %p241 = por %p239, %p240
      %p243 = scmp.ne.s32.totalorder %s226, %s242
      %p244 = scmp.eq.s32.totalorder %s24, 0
      %p245 = por %p243, %p244
      %p246 = scmp.le.s32.totalorder 1, %s18
      %p247 = scmp.lt.s32.totalorder %s18, 3
      %p248 = pnand %p246, %p247
      %p249 = pneg %p248
      // Predicated region
      $region9: #{tpu_custom_call.1} parent=5 // pred_check
        _
      $region10: #{tpu_custom_call.1} parent=5 // pred_check_branch
        %251 = sbr.rel (%p248) target = $region12
      $region11: #{tpu_custom_call.1} parent=5 // pred_region
        %s252 = ssub.s32 %s18, 1
        // Predicated region
        $region13: #{tpu_custom_call.1} parent=11 // pred_check
          %p253 = pneg %p65
        $region14: #{tpu_custom_call.1} parent=11 // pred_check_branch
          %255 = sbr.rel (%p253) target = $region16
        $region15: #{tpu_custom_call.1} parent=11 // pred_region
          _
        $region16: #{tpu_custom_call.1} parent=11 // pred_fallthru
          _
        // Predicated region
        $region17: #{tpu_custom_call.1} parent=11 // pred_check
          %p256 = pneg %p86
        $region18: #{tpu_custom_call.1} parent=11 // pred_check_branch
          %258 = sbr.rel (%p256) target = $region20
        $region19: #{tpu_custom_call.1} parent=11 // pred_region
          _
        $region20: #{tpu_custom_call.1} parent=11 // pred_fallthru
          _
        // Predicated region
        $region21: #{tpu_custom_call.1} parent=11 // pred_check
          %p259 = pneg %p107
        $region22: #{tpu_custom_call.1} parent=11 // pred_check_branch
          %261 = sbr.rel (%p259) target = $region24
        $region23: #{tpu_custom_call.1} parent=11 // pred_region
          _
        $region24: #{tpu_custom_call.1} parent=11 // pred_fallthru
          _
        // Predicated region
        $region25: #{tpu_custom_call.1} parent=11 // pred_check
          %p262 = pneg %p128
        $region26: #{tpu_custom_call.1} parent=11 // pred_check_branch
          %264 = sbr.rel (%p262) target = $region28
        $region27: #{tpu_custom_call.1} parent=11 // pred_region
          _
        $region28: #{tpu_custom_call.1} parent=11 // pred_fallthru
          _
        // Predicated region
        $region29: #{tpu_custom_call.1} parent=11 // pred_check
          %p265 = pneg %p149
        $region30: #{tpu_custom_call.1} parent=11 // pred_check_branch
          %267 = sbr.rel (%p265) target = $region32
        $region31: #{tpu_custom_call.1} parent=11 // pred_region
          _
        $region32: #{tpu_custom_call.1} parent=11 // pred_fallthru
          _
        // Predicated region
        $region33: #{tpu_custom_call.1} parent=11 // pred_check
          %p268 = pneg %p170
        $region34: #{tpu_custom_call.1} parent=11 // pred_check_branch
          %270 = sbr.rel (%p268) target = $region36
        $region35: #{tpu_custom_call.1} parent=11 // pred_region
          _
        $region36: #{tpu_custom_call.1} parent=11 // pred_fallthru
          _
        // Predicated region
        $region37: #{tpu_custom_call.1} parent=11 // pred_check
          %p271 = pneg %p191
        $region38: #{tpu_custom_call.1} parent=11 // pred_check_branch
          %273 = sbr.rel (%p271) target = $region40
        $region39: #{tpu_custom_call.1} parent=11 // pred_region
          _
        $region40: #{tpu_custom_call.1} parent=11 // pred_fallthru
          _
        // Predicated region
        $region41: #{tpu_custom_call.1} parent=11 // pred_check
          %p274 = pneg %p212
        $region42: #{tpu_custom_call.1} parent=11 // pred_check_branch
          %276 = sbr.rel (%p274) target = $region44
        $region43: #{tpu_custom_call.1} parent=11 // pred_region
          _
        $region44: #{tpu_custom_call.1} parent=11 // pred_fallthru
          _
      $region12: #{tpu_custom_call.1} parent=5 // pred_fallthru
        _
      %p277 = scmp.lt.s32.totalorder %s18, 2
      // Predicated region
      $region45: #{tpu_custom_call.1} parent=5 // pred_check
        %p278 = pneg %p277
      $region46: #{tpu_custom_call.1} parent=5 // pred_check_branch
        %280 = sbr.rel (%p278) target = $region48
      $region47: #{tpu_custom_call.1} parent=5 // pred_region
        // Predicated region
        $region49: #{tpu_custom_call.1} parent=47 // pred_check
          %p281 = pneg %p38
        $region50: #{tpu_custom_call.1} parent=47 // pred_check_branch
          %283 = sbr.rel (%p281) target = $region52
        $region51: #{tpu_custom_call.1} parent=47 // pred_region
          %p284 = scmp.lt.s32.totalorder %s18, 1
          %s285 = scalar_select %p284, %s18, 1
          %s286 = smul.addr %s285, 2
          %s287 = smul.addr %s286, 4
          %s288 = scalar_lea.vmem %s0, %s287
        $region52: #{tpu_custom_call.1} parent=47 // pred_fallthru
          _
      $region48: #{tpu_custom_call.1} parent=5 // pred_fallthru
        _
      %p289 = scmp.le.s32.totalorder 1, %s18
      %p290 = scmp.lt.s32.totalorder %s18, 3
      %p291 = pnand %p289, %p290
      %p292 = pneg %p291
      // Predicated region
      $region53: #{tpu_custom_call.1} parent=5 // pred_check
        _
      $region54: #{tpu_custom_call.1} parent=5 // pred_check_branch
        %294 = sbr.rel (%p291) target = $region56
      $region55: #{tpu_custom_call.1} parent=5 // pred_region
        %s295 = ssub.s32 %s18, 1
        %p296 = scmp.lt.s32.totalorder %s23, 1
        %s297 = scalar_select %p296, %s23, 1
        %s298 = smul.addr %s297, 2
        %s299 = smul.addr %s298, 4
        %s300 = scalar_lea.vmem %s0, %s299
        %p301 = pneg %p44
        %p302 = pneg %p41
        %p303 = pneg %p65
        %p304 = pneg %p62
        %p305 = pneg %p86
        %p306 = pneg %p83
        %p307 = pneg %p107
        %p308 = pneg %p104
        %p309 = pneg %p128
        %p310 = pneg %p125
        %p311 = pneg %p149
        %p312 = pneg %p146
        %p313 = pneg %p170
        %p314 = pneg %p167
        %p315 = pneg %p191
        %p316 = pneg %p188
        %p317 = pneg %p212
        %p318 = pneg %p209
        %p319 = pneg %p238
        %p320 = pneg %p235
        %s321 = sand.u32 %s225, 1
        %s322 = scalar_lea.sflag [#allocation5], %s321
        %s323 = sand.u32 %s225, 1
        %s324 = smul.addr %s323, 16
        %s325 = scalar_lea.vmem [#allocation4], %s324
        %p326 = scmp.lt.s32.totalorder %s23, 1
        %s327 = scalar_select %p326, %s23, 1
        %s328 = smul.addr %s327, 2
        %s329 = smul.addr %s328, 4
        %s330 = scalar_lea.vmem %s0, %s329
        %v331 = vld [vmem:[%s330] sm:$0xff]
        %v332 = vld [vmem:[%s1] sm:$0xff]
        %v333 = vld [vmem:[%s2] sm:$0xff]
        %335 = vset.pattern.permute.xlu0 0
        %336 = vperm.xlu0 %335, %v333
        %v337 = vpop.permute.xlu0 %336
        %v340 = vcombine.high %v331, %v331
        %vm341 = vcmask 31744
        %v343 = vsel %vm341, %v332, 0
        %vm345 = vcmask 1043456
        %v346 = vsel %vm345, %v331, 0
        %v348 = vsel %vm345, %v340, 0
        %350 = vmatprep.subr.mxu0 %v348
        %351 = vmatpush1.msra.mxu0 %v346
        %352 = vmatprep.subr.mxu0 0.0
        %353 = vmatpush1.msra.mxu0 0.0
        %354 = vmatprep.subr.mxu0 0.0
        %355 = vmatpush1.msra.mxu0 0.0
        %356 = vmatprep.subr.mxu0 0.0
        %357 = vmatpush1.msra.mxu0 0.0
        %358 = vmatprep.subr.mxu0 0.0
        %359 = vmatpush1.msra.mxu0 0.0
        %360 = vmatprep.subr.mxu0 0.0
        %361 = vmatpush1.msra.mxu0 0.0
        %362 = vmatprep.subr.mxu0 0.0
        %363 = vmatpush1.msra.mxu0 0.0
        %364 = vmatprep.subr.mxu0 0.0
        %365 = vmatpush1.msra.mxu0 0.0
        %366 = vmatprep.subr.mxu0 0.0
        %367 = vmatpush1.msra.mxu0 0.0
        %368 = vmatprep.subr.mxu0 0.0
        %369 = vmatpush1.msra.mxu0 0.0
        %370 = vmatprep.subr.mxu0 0.0
        %371 = vmatpush1.msra.mxu0 0.0
        %372 = vmatprep.subr.mxu0 0.0
        %373 = vmatpush1.msra.mxu0 0.0
        %374 = vmatprep.subr.mxu0 0.0
        %375 = vmatpush1.msra.mxu0 0.0
        %376 = vmatprep.subr.mxu0 0.0
        %377 = vmatpush1.msra.mxu0 0.0
        %378 = vmatprep.subr.mxu0 0.0
        %379 = vmatpush1.msra.mxu0 0.0
        %380 = vmatprep.subr.mxu0 0.0
        %381 = vmatpush1.msra.mxu0 0.0
        %382 = vmatprep.subr.mxu0 0.0
        %383 = vmatpush1.msra.mxu0 0.0
        %384 = vmatprep.subr.mxu0 0.0
        %385 = vmatpush1.msra.mxu0 0.0
        %386 = vmatprep.subr.mxu0 0.0
        %387 = vmatpush1.msra.mxu0 0.0
        %388 = vmatprep.subr.mxu0 0.0
        %389 = vmatpush1.msra.mxu0 0.0
        %390 = vmatprep.subr.mxu0 0.0
        %391 = vmatpush1.msra.mxu0 0.0
        %392 = vmatprep.subr.mxu0 0.0
        %393 = vmatpush1.msra.mxu0 0.0
        %394 = vmatprep.subr.mxu0 0.0
        %395 = vmatpush1.msra.mxu0 0.0
        %396 = vmatprep.subr.mxu0 0.0
        %397 = vmatpush1.msra.mxu0 0.0
        %398 = vmatprep.subr.mxu0 0.0
        %399 = vmatpush1.msra.mxu0 0.0
        %400 = vmatprep.subr.mxu0 0.0
        %401 = vmatpush1.msra.mxu0 0.0
        %402 = vmatprep.subr.mxu0 0.0
        %403 = vmatpush1.msra.mxu0 0.0
        %404 = vmatprep.subr.mxu0 0.0
        %405 = vmatpush1.msra.mxu0 0.0
        %406 = vmatprep.subr.mxu0 0.0
        %407 = vmatpush1.msra.mxu0 0.0
        %408 = vmatprep.subr.mxu0 0.0
        %409 = vmatpush1.msra.mxu0 0.0
        %410 = vmatprep.subr.mxu0 0.0
        %411 = vmatpush1.msra.mxu0 0.0
        %412 = vmatprep.subr.mxu0 0.0
        %413 = vmatpush1.msra.mxu0 0.0
        %414 = vmatprep.mubr.f32.mxu0 0.0
        %415 = vmatmul.mubr.f32.gmra.mrb[0].mxu0 %v343
        %v416 = vpop.f32.mrb[0].mxu0
        %v417 = vadd.f32 %v337, %v416
        %v418 = vpop.f32.mrb[0].mxu0
        %v419 = vadd.f32 %v337, %v418
        %420 = vdwg.mxu0
        %421 = vst [vmem:[#allocation2] sm:$0xff] 0.0
        %422 = vst [vmem:[#allocation2 + $0x8] sm:$0xff] 0.0
        %vm423 = vcmask 277504
        %424 = vst.msk [vmem:[#allocation2 + $0x10] sm:$0xff] %vm423, 0.0
        %427 = vrot.lane.b32.xlu0 %v417, 17
        %v428 = vpop.permute.xlu0 %427
        %429 = vrot.lane.b32.xlu0 %v419, 17
        %v430 = vpop.permute.xlu0 %429
        %vm431 = vcmask 138240
        %v432 = vsel %vm431, %v428, %v430
        %vm436 = vcmask 1047688
        %437 = vst.msk [vmem:[#allocation2] sm:$0xff] %vm436, %v428
        %438 = vst [vmem:[#allocation2 + $0x8] sm:$0xff] %v432
        %439 = vst.msk [vmem:[#allocation2 + $0x10] sm:$0xff] %vm431, %v430
        %v440 = vlaneseq
        %v441 = vand.u32 %v440, 127
        %v442 = vadd.s32 %v441, 128
        %vm443 = vcmp.lt.s32.totalorder %v441, 0
        %v444 = vsub.s32 0, %v441
        %v445 = vsel %vm443, %v444, %v441
        %v446 = vshrl.u32 %v445, 4
        %v447 = vand.u32 %v445, 15
        %v448 = vsub.s32 0, %v447
        %v449 = vsel %vm443, %v448, %v447
        %vm450 = vcmp.lt.s32.totalorder %v442, 0
        %v451 = vsub.s32 0, %v442
        %v452 = vsel %vm450, %v451, %v442
        %v453 = vshrl.u32 %v452, 4
        %v454 = vand.u32 %v452, 15
        %v455 = vsub.s32 0, %v454
        %v456 = vsel %vm450, %v455, %v454
        %vm457 = vcmp.ne.s32.totalorder %v449, 0
        %vm458 = vcmp.ne.s32.totalorder %v456, 0
        %vm459 = vcmp.lt.s32.totalorder %v449, 0
        %vm460 = vcmp.lt.s32.totalorder %v456, 0
        %vm461 = vmand %vm459, %vm457
        %vm462 = vmand %vm460, %vm458
        %v463 = vadd.s32 %v449, 16
        %v464 = vadd.s32 %v456, 16
        %v465 = vsel %vm461, %v463, %v449
        %v466 = vsel %vm462, %v464, %v456
        %vm467 = vcmp.ne.s32.totalorder %v465, 15
        %vm468 = vcmp.ne.s32.totalorder %v466, 15
        %vm469 = vcmp.ne.s32.totalorder %v465, 0
        %vm470 = vcmp.ne.s32.totalorder %v466, 0
        %v471 = vld [vmem:[#allocation2] sm:$0xff]
        %v472 = vld [vmem:[#allocation2 + $0x8] sm:$0xff]
        %v473 = vsel %vm469, %v471, 0.0
        %v474 = vsel %vm470, %v472, 0.0
        %475 = vst [vmem:[#allocation3] sm:$0xff] %v473
        %476 = vst [vmem:[#allocation3 + $0x8] sm:$0xff] %v474
        %v477 = vld [vmem:[#allocation2] sm:$0xff]
        %v478 = vld [vmem:[#allocation2 + $0x8] sm:$0xff]
        %v479 = vld [vmem:[#allocation2 + $0x10] sm:$0xff]
        %483 = vrot.lane.b32.xlu0 %v477, 127
        %v484 = vpop.permute.xlu0 %483
        %485 = vrot.lane.b32.xlu0 %v478, 127
        %v486 = vpop.permute.xlu0 %485
        %487 = vrot.lane.b32.xlu0 %v479, 127
        %v488 = vpop.permute.xlu0 %487
        %vm489 = vcmask 1039360
        %v490 = vsel %vm489, %v484, %v486
        %v491 = vsel %vm489, %v486, %v488
        %494 = vst [vmem:[#allocation3 + $0x10] sm:$0xff] %v490
        %495 = vst [vmem:[#allocation3 + $0x18] sm:$0xff] %v491
        %v496 = vld [vmem:[#allocation2] sm:$0xff]
        %v497 = vld [vmem:[#allocation2 + $0x8] sm:$0xff]
        %v498 = vld [vmem:[#allocation2 + $0x10] sm:$0xff]
        %502 = vrot.lane.b32.xlu0 %v496, 126
        %v503 = vpop.permute.xlu0 %502
        %504 = vrot.lane.b32.xlu0 %v497, 126
        %v505 = vpop.permute.xlu0 %504
        %506 = vrot.lane.b32.xlu0 %v498, 126
        %v507 = vpop.permute.xlu0 %506
        %vm508 = vcmask 1031168
        %v509 = vsel %vm508, %v503, %v505
        %v510 = vsel %vm508, %v505, %v507
        %v513 = vsel %vm467, %v509, 0.0
        %v514 = vsel %vm468, %v510, 0.0
        %515 = vst [vmem:[#allocation3 + $0x20] sm:$0xff] %v513
        %516 = vst [vmem:[#allocation3 + $0x28] sm:$0xff] %v514
        %v517 = vld [vmem:[#allocation2] sm:$0xff]
        %v518 = vld [vmem:[#allocation2 + $0x8] sm:$0xff]
        %v519 = vld [vmem:[#allocation2 + $0x10] sm:$0xff]
        %523 = vrot.lane.b32.xlu0 %v517, 112
        %v524 = vpop.permute.xlu0 %523
        %525 = vrot.lane.b32.xlu0 %v518, 112
        %v526 = vpop.permute.xlu0 %525
        %527 = vrot.lane.b32.xlu0 %v519, 112
        %v528 = vpop.permute.xlu0 %527
        %vm529 = vcmask 916480
        %v530 = vsel %vm529, %v524, %v526
        %v531 = vsel %vm529, %v526, %v528
        %v534 = vsel %vm469, %v530, 0.0
        %v535 = vsel %vm470, %v531, 0.0
        %536 = vst [vmem:[#allocation3 + $0x30] sm:$0xff] %v534
        %537 = vst [vmem:[#allocation3 + $0x38] sm:$0xff] %v535
        %v538 = vld [vmem:[#allocation2] sm:$0xff]
        %v539 = vld [vmem:[#allocation2 + $0x8] sm:$0xff]
        %v540 = vld [vmem:[#allocation2 + $0x10] sm:$0xff]
        %544 = vrot.lane.b32.xlu0 %v538, 111
        %v545 = vpop.permute.xlu0 %544
        %546 = vrot.lane.b32.xlu0 %v539, 111
        %v547 = vpop.permute.xlu0 %546
        %548 = vrot.lane.b32.xlu0 %v540, 111
        %v549 = vpop.permute.xlu0 %548
        %vm550 = vcmask 908288
        %v551 = vsel %vm550, %v545, %v547
        %v552 = vsel %vm550, %v547, %v549
        %555 = vst [vmem:[#allocation3 + $0x40] sm:$0xff] %v551
        %556 = vst [vmem:[#allocation3 + $0x48] sm:$0xff] %v552
        %v557 = vld [vmem:[#allocation2] sm:$0xff]
        %v558 = vld [vmem:[#allocation2 + $0x8] sm:$0xff]
        %v559 = vld [vmem:[#allocation2 + $0x10] sm:$0xff]
        %563 = vrot.lane.b32.xlu0 %v557, 110
        %v564 = vpop.permute.xlu0 %563
        %565 = vrot.lane.b32.xlu0 %v558, 110
        %v566 = vpop.permute.xlu0 %565
        %567 = vrot.lane.b32.xlu0 %v559, 110
        %v568 = vpop.permute.xlu0 %567
        %vm569 = vcmask 900096
        %v570 = vsel %vm569, %v564, %v566
        %v571 = vsel %vm569, %v566, %v568
        %v574 = vsel %vm467, %v570, 0.0
        %v575 = vsel %vm468, %v571, 0.0
        %576 = vst [vmem:[#allocation3 + $0x50] sm:$0xff] %v574
        %577 = vst [vmem:[#allocation3 + $0x58] sm:$0xff] %v575
        %v578 = vld [vmem:[#allocation2] sm:$0xff]
        %v579 = vld [vmem:[#allocation2 + $0x8] sm:$0xff]
        %v580 = vld [vmem:[#allocation2 + $0x10] sm:$0xff]
        %584 = vrot.lane.b32.xlu0 %v578, 96
        %v585 = vpop.permute.xlu0 %584
        %586 = vrot.lane.b32.xlu0 %v579, 96
        %v587 = vpop.permute.xlu0 %586
        %588 = vrot.lane.b32.xlu0 %v580, 96
        %v589 = vpop.permute.xlu0 %588
        %vm590 = vcmask 785408
        %v591 = vsel %vm590, %v585, %v587
        %v592 = vsel %vm590, %v587, %v589
        %v595 = vsel %vm469, %v591, 0.0
        %v596 = vsel %vm470, %v592, 0.0
        %597 = vst [vmem:[#allocation3 + $0x60] sm:$0xff] %v595
        %598 = vst [vmem:[#allocation3 + $0x68] sm:$0xff] %v596
        %v599 = vld [vmem:[#allocation2] sm:$0xff]
        %v600 = vld [vmem:[#allocation2 + $0x8] sm:$0xff]
        %v601 = vld [vmem:[#allocation2 + $0x10] sm:$0xff]
        %605 = vrot.lane.b32.xlu0 %v599, 95
        %v606 = vpop.permute.xlu0 %605
        %607 = vrot.lane.b32.xlu0 %v600, 95
        %v608 = vpop.permute.xlu0 %607
        %609 = vrot.lane.b32.xlu0 %v601, 95
        %v610 = vpop.permute.xlu0 %609
        %vm611 = vcmask 777216
        %v612 = vsel %vm611, %v606, %v608
        %v613 = vsel %vm611, %v608, %v610
        %616 = vst [vmem:[#allocation3 + $0x70] sm:$0xff] %v612
        %617 = vst [vmem:[#allocation3 + $0x78] sm:$0xff] %v613
        %v618 = vld [vmem:[#allocation2] sm:$0xff]
        %v619 = vld [vmem:[#allocation2 + $0x8] sm:$0xff]
        %v620 = vld [vmem:[#allocation2 + $0x10] sm:$0xff]
        %624 = vrot.lane.b32.xlu0 %v618, 94
        %v625 = vpop.permute.xlu0 %624
        %626 = vrot.lane.b32.xlu0 %v619, 94
        %v627 = vpop.permute.xlu0 %626
        %628 = vrot.lane.b32.xlu0 %v620, 94
        %v629 = vpop.permute.xlu0 %628
        %vm630 = vcmask 769024
        %v631 = vsel %vm630, %v625, %v627
        %v632 = vsel %vm630, %v627, %v629
        %v635 = vsel %vm467, %v631, 0.0
        %v636 = vsel %vm468, %v632, 0.0
        %637 = vst [vmem:[#allocation3 + $0x80] sm:$0xff] %v635
        %638 = vst [vmem:[#allocation3 + $0x88] sm:$0xff] %v636
        %v639 = vld [vmem:[%s3] sm:$0xff]
        %v640 = vld [vmem:[#allocation3] sm:$0xff]
        %v641 = vld [vmem:[#allocation3 + $0x8] sm:$0xff]
        %v642 = vld [vmem:[#allocation3 + $0x10] sm:$0xff]
        %v643 = vld [vmem:[#allocation3 + $0x18] sm:$0xff]
        %v644 = vld [vmem:[#allocation3 + $0x20] sm:$0xff]
        %v645 = vld [vmem:[#allocation3 + $0x28] sm:$0xff]
        %v646 = vld [vmem:[#allocation3 + $0x30] sm:$0xff]
        %v647 = vld [vmem:[#allocation3 + $0x38] sm:$0xff]
        %v648 = vld [vmem:[#allocation3 + $0x40] sm:$0xff]
        %v649 = vld [vmem:[#allocation3 + $0x48] sm:$0xff]
        %v650 = vld [vmem:[#allocation3 + $0x50] sm:$0xff]
        %v651 = vld [vmem:[#allocation3 + $0x58] sm:$0xff]
        %v652 = vld [vmem:[#allocation3 + $0x60] sm:$0xff]
        %v653 = vld [vmem:[#allocation3 + $0x68] sm:$0xff]
        %v654 = vld [vmem:[#allocation3 + $0x70] sm:$0xff]
        %v655 = vld [vmem:[#allocation3 + $0x78] sm:$0xff]
        %v656 = vld [vmem:[#allocation3 + $0x80] sm:$0xff]
        %v657 = vld [vmem:[#allocation3 + $0x88] sm:$0xff]
        %v658 = vld [vmem:[%s4] sm:$0xff]
        %660 = vset.pattern.permute.xlu0 0
        %661 = vperm.xlu0 %660, %v658
        %v662 = vpop.permute.xlu0 %661
        %vm664 = vcmask 588800
        %v666 = vsel %vm664, %v639, 0
        %668 = vmatprep.subr.mxu0 %v641
        %669 = vmatpush1.msra.mxu0 %v640
        %670 = vmatprep.subr.mxu0 %v643
        %671 = vmatpush1.msra.mxu0 %v642
        %672 = vmatprep.subr.mxu0 %v645
        %673 = vmatpush1.msra.mxu0 %v644
        %674 = vmatprep.subr.mxu0 %v647
        %675 = vmatpush1.msra.mxu0 %v646
        %676 = vmatprep.subr.mxu0 %v649
        %677 = vmatpush1.msra.mxu0 %v648
        %678 = vmatprep.subr.mxu0 %v651
        %679 = vmatpush1.msra.mxu0 %v650
        %680 = vmatprep.subr.mxu0 %v653
        %681 = vmatpush1.msra.mxu0 %v652
        %682 = vmatprep.subr.mxu0 %v655
        %683 = vmatpush1.msra.mxu0 %v654
        %684 = vmatprep.subr.mxu0 %v657
        %685 = vmatpush1.msra.mxu0 %v656
        %686 = vmatprep.subr.mxu0 0.0
        %687 = vmatpush1.msra.mxu0 0.0
        %688 = vmatprep.subr.mxu0 0.0
        %689 = vmatpush1.msra.mxu0 0.0
        %690 = vmatprep.subr.mxu0 0.0
        %691 = vmatpush1.msra.mxu0 0.0
        %692 = vmatprep.subr.mxu0 0.0
        %693 = vmatpush1.msra.mxu0 0.0
        %694 = vmatprep.subr.mxu0 0.0
        %695 = vmatpush1.msra.mxu0 0.0
        %696 = vmatprep.subr.mxu0 0.0
        %697 = vmatpush1.msra.mxu0 0.0
        %698 = vmatprep.subr.mxu0 0.0
        %699 = vmatpush1.msra.mxu0 0.0
        %700 = vmatprep.subr.mxu0 0.0
        %701 = vmatpush1.msra.mxu0 0.0
        %702 = vmatprep.subr.mxu0 0.0
        %703 = vmatpush1.msra.mxu0 0.0
        %704 = vmatprep.subr.mxu0 0.0
        %705 = vmatpush1.msra.mxu0 0.0
        %706 = vmatprep.subr.mxu0 0.0
        %707 = vmatpush1.msra.mxu0 0.0
        %708 = vmatprep.subr.mxu0 0.0
        %709 = vmatpush1.msra.mxu0 0.0
        %710 = vmatprep.subr.mxu0 0.0
        %711 = vmatpush1.msra.mxu0 0.0
        %712 = vmatprep.subr.mxu0 0.0
        %713 = vmatpush1.msra.mxu0 0.0
        %714 = vmatprep.subr.mxu0 0.0
        %715 = vmatpush1.msra.mxu0 0.0
        %716 = vmatprep.subr.mxu0 0.0
        %717 = vmatpush1.msra.mxu0 0.0
        %718 = vmatprep.subr.mxu0 0.0
        %719 = vmatpush1.msra.mxu0 0.0
        %720 = vmatprep.subr.mxu0 0.0
        %721 = vmatpush1.msra.mxu0 0.0
        %722 = vmatprep.subr.mxu0 0.0
        %723 = vmatpush1.msra.mxu0 0.0
        %724 = vmatprep.subr.mxu0 0.0
        %725 = vmatpush1.msra.mxu0 0.0
        %726 = vmatprep.subr.mxu0 0.0
        %727 = vmatpush1.msra.mxu0 0.0
        %728 = vmatprep.subr.mxu0 0.0
        %729 = vmatpush1.msra.mxu0 0.0
        %730 = vmatprep.subr.mxu0 0.0
        %731 = vmatpush1.msra.mxu0 0.0
        %732 = vmatprep.mubr.f32.mxu0 0.0
        %733 = vmatmul.mubr.f32.gmra.mrb[0].mxu0 %v666
        %v734 = vpop.f32.mrb[0].mxu0
        %v735 = vadd.f32 %v662, %v734
        %v736 = vpop.f32.mrb[0].mxu0
        %v737 = vadd.f32 %v662, %v736
        %738 = vdwg.mxu0
        %v739 = vld [vmem:[%s5] sm:$0xff]
        %v740 = vld [vmem:[%s6] sm:$0xff]
        %742 = vset.pattern.permute.xlu0 0
        %743 = vperm.xlu0 %742, %v740
        %v744 = vpop.permute.xlu0 %743
        %vm746 = vcmask 64512
        %v748 = vsel %vm746, %v739, 0
        %750 = vmatprep.subr.mxu0 %v737
        %751 = vmatpush1.msra.mxu0 %v735
        %752 = vmatprep.subr.mxu0 0.0
        %753 = vmatpush1.msra.mxu0 0.0
        %754 = vmatprep.subr.mxu0 0.0
        %755 = vmatpush1.msra.mxu0 0.0
        %756 = vmatprep.subr.mxu0 0.0
        %757 = vmatpush1.msra.mxu0 0.0
        %758 = vmatprep.subr.mxu0 0.0
        %759 = vmatpush1.msra.mxu0 0.0
        %760 = vmatprep.subr.mxu0 0.0
        %761 = vmatpush1.msra.mxu0 0.0
        %762 = vmatprep.subr.mxu0 0.0
        %763 = vmatpush1.msra.mxu0 0.0
        %764 = vmatprep.subr.mxu0 0.0
        %765 = vmatpush1.msra.mxu0 0.0
        %766 = vmatprep.subr.mxu0 0.0
        %767 = vmatpush1.msra.mxu0 0.0
        %768 = vmatprep.subr.mxu0 0.0
        %769 = vmatpush1.msra.mxu0 0.0
        %770 = vmatprep.subr.mxu0 0.0
        %771 = vmatpush1.msra.mxu0 0.0
        %772 = vmatprep.subr.mxu0 0.0
        %773 = vmatpush1.msra.mxu0 0.0
        %774 = vmatprep.subr.mxu0 0.0
        %775 = vmatpush1.msra.mxu0 0.0
        %776 = vmatprep.subr.mxu0 0.0
        %777 = vmatpush1.msra.mxu0 0.0
        %778 = vmatprep.subr.mxu0 0.0
        %779 = vmatpush1.msra.mxu0 0.0
        %780 = vmatprep.subr.mxu0 0.0
        %781 = vmatpush1.msra.mxu0 0.0
        %782 = vmatprep.subr.mxu0 0.0
        %783 = vmatpush1.msra.mxu0 0.0
        %784 = vmatprep.subr.mxu0 0.0
        %785 = vmatpush1.msra.mxu0 0.0
        %786 = vmatprep.subr.mxu0 0.0
        %787 = vmatpush1.msra.mxu0 0.0
        %788 = vmatprep.subr.mxu0 0.0
        %789 = vmatpush1.msra.mxu0 0.0
        %790 = vmatprep.subr.mxu0 0.0
        %791 = vmatpush1.msra.mxu0 0.0
        %792 = vmatprep.subr.mxu0 0.0
        %793 = vmatpush1.msra.mxu0 0.0
        %794 = vmatprep.subr.mxu0 0.0
        %795 = vmatpush1.msra.mxu0 0.0
        %796 = vmatprep.subr.mxu0 0.0
        %797 = vmatpush1.msra.mxu0 0.0
        %798 = vmatprep.subr.mxu0 0.0
        %799 = vmatpush1.msra.mxu0 0.0
        %800 = vmatprep.subr.mxu0 0.0
        %801 = vmatpush1.msra.mxu0 0.0
        %802 = vmatprep.subr.mxu0 0.0
        %803 = vmatpush1.msra.mxu0 0.0
        %804 = vmatprep.subr.mxu0 0.0
        %805 = vmatpush1.msra.mxu0 0.0
        %806 = vmatprep.subr.mxu0 0.0
        %807 = vmatpush1.msra.mxu0 0.0
        %808 = vmatprep.subr.mxu0 0.0
        %809 = vmatpush1.msra.mxu0 0.0
        %810 = vmatprep.subr.mxu0 0.0
        %811 = vmatpush1.msra.mxu0 0.0
        %812 = vmatprep.subr.mxu0 0.0
        %813 = vmatpush1.msra.mxu0 0.0
        %814 = vmatprep.mubr.f32.mxu0 0.0
        %815 = vmatmul.mubr.f32.gmra.mrb[0].mxu0 %v748
        %v816 = vpop.f32.mrb[0].mxu0
        %v817 = vadd.f32 %v744, %v816
        %v818 = vpop.f32.mrb[0].mxu0
        %v819 = vadd.f32 %v744, %v818
        %820 = vdwg.mxu0
        %v821 = vld [vmem:[%s7] sm:$0xff]
        %v822 = vld [vmem:[%s8] sm:$0xff]
        %824 = vset.pattern.permute.xlu0 0
        %825 = vperm.xlu0 %824, %v822
        %v826 = vpop.permute.xlu0 %825
        %v829 = vsel %vm341, %v821, 0
        %831 = vmatprep.subr.mxu0 %v348
        %832 = vmatpush1.msra.mxu0 %v346
        %833 = vmatprep.subr.mxu0 0.0
        %834 = vmatpush1.msra.mxu0 0.0
        %835 = vmatprep.subr.mxu0 0.0
        %836 = vmatpush1.msra.mxu0 0.0
        %837 = vmatprep.subr.mxu0 0.0
        %838 = vmatpush1.msra.mxu0 0.0
        %839 = vmatprep.subr.mxu0 0.0
        %840 = vmatpush1.msra.mxu0 0.0
        %841 = vmatprep.subr.mxu0 0.0
        %842 = vmatpush1.msra.mxu0 0.0
        %843 = vmatprep.subr.mxu0 0.0
        %844 = vmatpush1.msra.mxu0 0.0
        %845 = vmatprep.subr.mxu0 0.0
        %846 = vmatpush1.msra.mxu0 0.0
        %847 = vmatprep.subr.mxu0 0.0
        %848 = vmatpush1.msra.mxu0 0.0
        %849 = vmatprep.subr.mxu0 0.0
        %850 = vmatpush1.msra.mxu0 0.0
        %851 = vmatprep.subr.mxu0 0.0
        %852 = vmatpush1.msra.mxu0 0.0
        %853 = vmatprep.subr.mxu0 0.0
        %854 = vmatpush1.msra.mxu0 0.0
        %855 = vmatprep.subr.mxu0 0.0
        %856 = vmatpush1.msra.mxu0 0.0
        %857 = vmatprep.subr.mxu0 0.0
        %858 = vmatpush1.msra.mxu0 0.0
        %859 = vmatprep.subr.mxu0 0.0
        %860 = vmatpush1.msra.mxu0 0.0
        %861 = vmatprep.subr.mxu0 0.0
        %862 = vmatpush1.msra.mxu0 0.0
        %863 = vmatprep.subr.mxu0 0.0
        %864 = vmatpush1.msra.mxu0 0.0
        %865 = vmatprep.subr.mxu0 0.0
        %866 = vmatpush1.msra.mxu0 0.0
        %867 = vmatprep.subr.mxu0 0.0
        %868 = vmatpush1.msra.mxu0 0.0
        %869 = vmatprep.subr.mxu0 0.0
        %870 = vmatpush1.msra.mxu0 0.0
        %871 = vmatprep.subr.mxu0 0.0
        %872 = vmatpush1.msra.mxu0 0.0
        %873 = vmatprep.subr.mxu0 0.0
        %874 = vmatpush1.msra.mxu0 0.0
        %875 = vmatprep.subr.mxu0 0.0
        %876 = vmatpush1.msra.mxu0 0.0
        %877 = vmatprep.subr.mxu0 0.0
        %878 = vmatpush1.msra.mxu0 0.0
        %879 = vmatprep.subr.mxu0 0.0
        %880 = vmatpush1.msra.mxu0 0.0
        %881 = vmatprep.subr.mxu0 0.0
        %882 = vmatpush1.msra.mxu0 0.0
        %883 = vmatprep.subr.mxu0 0.0
        %884 = vmatpush1.msra.mxu0 0.0
        %885 = vmatprep.subr.mxu0 0.0
        %886 = vmatpush1.msra.mxu0 0.0
        %887 = vmatprep.subr.mxu0 0.0
        %888 = vmatpush1.msra.mxu0 0.0
        %889 = vmatprep.subr.mxu0 0.0
        %890 = vmatpush1.msra.mxu0 0.0
        %891 = vmatprep.subr.mxu0 0.0
        %892 = vmatpush1.msra.mxu0 0.0
        %893 = vmatprep.subr.mxu0 0.0
        %894 = vmatpush1.msra.mxu0 0.0
        %895 = vmatprep.mubr.f32.mxu0 0.0
        %896 = vmatmul.mubr.f32.gmra.mrb[0].mxu0 %v829
        %v897 = vpop.f32.mrb[0].mxu0
        %v898 = vadd.f32 %v826, %v897
        %v899 = vpop.f32.mrb[0].mxu0
        %v900 = vadd.f32 %v826, %v899
        %901 = vdwg.mxu0
        %v902 = vadd.f32 %v817, %v898
        %v903 = vadd.f32 %v819, %v900
        %904 = vst [vmem:[%s325] sm:$0xff] %v902
        %905 = vst [vmem:[%s325 + $0x8] sm:$0xff] %v903
        %s906 = sand.u32 %s225, 1
        %s907 = scalar_lea.sflag [#allocation5], %s906
        %s908 = sand.u32 %s225, 1
        %s909 = smul.addr %s908, 16
        %s910 = scalar_lea.vmem [#allocation4], %s909
        // Predicated region
        $region57: #{tpu_custom_call.1} parent=55 // pred_check
          %p911 = pneg %p235
        $region58: #{tpu_custom_call.1} parent=55 // pred_check_branch
          %913 = sbr.rel (%p911) target = $region60
        $region59: #{tpu_custom_call.1} parent=55 // pred_region
          %s915 = ssub.s32 256, 256
          %916 = vsyncadd %s907, %s915
          %s917 = smul.addr %s23, 2
          %s918 = smul.addr %s917, 128
          %s919 = scalar_lea.hbm %s9, %s918
          %s921 = sshll.u32 %s910, 4
          %s922 = int_to_ptr.vmem [resolvable:$true] %s921
          %924 = dma.vmem_to_hbm [thread:$0]  %s922, 256, %s919, %s907
        $region60: #{tpu_custom_call.1} parent=55 // pred_fallthru
          _
      $region56: #{tpu_custom_call.1} parent=5 // pred_fallthru
        _
      %p925 = scmp.le.s32.totalorder 2, %s18
      // Predicated region
      $region61: #{tpu_custom_call.1} parent=5 // pred_check
        %p926 = pneg %p925
      $region62: #{tpu_custom_call.1} parent=5 // pred_check_branch
        %928 = sbr.rel (%p926) target = $region64
      $region63: #{tpu_custom_call.1} parent=5 // pred_region
        %s929 = ssub.s32 %s18, 2
        // Predicated region
        $region65: #{tpu_custom_call.1} parent=63 // pred_check
          %p930 = pneg %p241
        $region66: #{tpu_custom_call.1} parent=63 // pred_check_branch
          %932 = sbr.rel (%p930) target = $region68
        $region67: #{tpu_custom_call.1} parent=63 // pred_region
          %s933 = sand.u32 %s226, 1
          %s934 = scalar_lea.sflag [#allocation5], %s933
          %s935 = sand.u32 %s226, 1
          %s936 = smul.addr %s935, 16
          %s937 = scalar_lea.vmem [#allocation4], %s936
          %938 = dma.done %s934, 256
        $region68: #{tpu_custom_call.1} parent=63 // pred_fallthru
          _
      $region64: #{tpu_custom_call.1} parent=5 // pred_fallthru
        _
    $region6: #{tpu_custom_call.1} parent=1 // loop_footer
      %s22 = sadd.s32 1, %s18
    $region7: #{tpu_custom_call.1} parent=1 // loop_footer_branch
      %17 = sbr.rel target = $region3
    $region8: #{tpu_custom_call.1} parent=1 // loop_exit
      _
    %939 = vsyncpa [#allocation5], 1
    %s940 = scalar_lea.sflag [#allocation5], 1
    %941 = vsyncpa %s940, 1

</llo_original>
